<compile_context>
chip_gen: v6e
topology: v6e:2x2x1
jax: 0.10.0
libtpu: 0.0.40
codegen_flags: <defaults>
</compile_context>

<pallas_src>
import jax
import jax.numpy as jnp
from jax.experimental import pallas as pl
from jax.experimental.pallas import tpu as pltpu


def _tf_enhance_kernel(x_ref, z_ref, w_ref, bias_ref, o_ref):
    w = w_ref[...]          # (C, 2C)  -- BN scale already folded in
    bias = bias_ref[...]    # (C, 1)   -- folded conv bias + BN shift
    # bn (leading block dim) is small and static; unrolled python loop keeps the
    # channel mix as clean 2-D dots.
    for i in range(x_ref.shape[0]):
        x = x_ref[i]                                      # (C, tm)
        cat = jnp.concatenate([x, z_ref[i]], axis=0)      # (2C, tm) sublane stack
        y = jnp.dot(w, cat, preferred_element_type=jnp.float32)  # (C, tm)
        y = jnp.maximum(y + bias, 0.0)                    # bias + ReLU
        o_ref[i] = (x + y).astype(o_ref.dtype)            # residual add


def _plan_tiles(N, C, M, *, dtype_bytes=4, vmem_step_budget=12 * (1 << 20)):
    """Pick (bn, tm): lane tile (multiple of 128) budgeted by VMEM bytes/step."""
    c_pad = ((C + 7) // 8) * 8                # sublane-padded channels in VMEM
    cat_pad = ((2 * C + 7) // 8) * 8          # in-kernel concat operand sublanes
    m_pad = pl.cdiv(M, 128) * 128

    # bytes per grid step ~= bn * (double-buffered x/z/out streams + concat temp) * tm * 4
    denom = (2 * 3 * c_pad + cat_pad) * dtype_bytes

    tm = (vmem_step_budget // denom) // 128 * 128
    tm = max(128, min(m_pad, tm))             # lane-dense, at most one full tile

    bn = 1
    if tm >= m_pad:
        tm = m_pad
        # Grow the batch block only while it divides N, fits the budget, and keeps
        # at least 2 grid steps (so both TensorCores get work on v7x).
        limit = max(1, N // 2)
        while (bn < limit and N % (2 * bn) == 0
               and 2 * bn * denom * tm <= vmem_step_budget):
            bn *= 2
    return bn, tm


def tf_enhance_encoder(x, z_mix, w, b, gamma, beta, run_mean, run_var,
                       eps=1e-5, vmem_step_budget=12 * (1 << 20)):
    """x, z_mix: (N, C, H, W) f32.  w: (C, 2C, 1, 1);  b/gamma/beta/run_*: (C,)."""
    N, C, H, W = x.shape
    M = H * W

    # NCHW -> (N, C, H*W): contiguous view, no HBM data movement.
    xf = x.reshape(N, C, M)
    zf = z_mix.reshape(N, C, M)

    # 1x1 conv over concat == single matmul with the concatenated-in-channel weight;
    # fold the eval-mode BN scale into the tiny (C, 2C) weight and the bias.
    w2d = w.reshape(C, 2 * C).astype(jnp.float32)
    s = gamma / jnp.sqrt(run_var + eps)                               # per-out-channel
    wcat = (w2d * s[:, None]).astype(jnp.float32)                     # (C, 2C)
    bias = (beta + (b - run_mean) * s).reshape(C, 1).astype(jnp.float32)

    bn, tm = _plan_tiles(N, C, M, vmem_step_budget=vmem_step_budget)
    grid = (N // bn, pl.cdiv(M, tm))

    out = pl.pallas_call(
        _tf_enhance_kernel,
        out_shape=jax.ShapeDtypeStruct((N, C, M), jnp.float32),
        grid_spec=pltpu.PrefetchScalarGridSpec(
            num_scalar_prefetch=0,
            grid=grid,
            in_specs=[
                pl.BlockSpec((bn, C, tm), lambda n, m: (n, 0, m)),   # x tile
                pl.BlockSpec((bn, C, tm), lambda n, m: (n, 0, m)),   # z tile
                pl.BlockSpec((C, 2 * C), lambda n, m: (0, 0)),       # folded weight (resident)
                pl.BlockSpec((C, 1), lambda n, m: (0, 0)),           # folded bias (resident)
            ],
            out_specs=pl.BlockSpec((bn, C, tm), lambda n, m: (n, 0, m)),
        ),
        compiler_params=pltpu.CompilerParams(
            dimension_semantics=("parallel", "parallel"),
            vmem_limit_bytes=32 * 1024 * 1024,   # >= default on v5e, safe on v6e/v7x
        ),
    )(xf, zf, wcat, bias)

    return out.reshape(N, C, H, W)


if __name__ == "__main__":
    key = jax.random.PRNGKey(0)
    N, C, H, W = 2, 4, 16, 16

    k_x, k_z, k_w, k_b, _, _ = jax.random.split(key, 6)
    x = jax.random.normal(k_x, (N, C, H, W), dtype=jnp.float32)
    z_mix = jax.random.normal(k_z, (N, C, H, W), dtype=jnp.float32)

    # Deterministic parameter init (Conv2d kaiming-uniform-like bound; BN defaults)
    fan_in = 2 * C
    bound = 1.0 / jnp.sqrt(fan_in)
    w = jax.random.uniform(k_w, (C, 2 * C, 1, 1), minval=-bound, maxval=bound,
                           dtype=jnp.float32)
    b = jax.random.uniform(k_b, (C,), minval=-bound, maxval=bound, dtype=jnp.float32)
    gamma = jnp.ones((C,), jnp.float32)
    beta = jnp.zeros((C,), jnp.float32)
    run_mean = jnp.zeros((C,), jnp.float32)
    run_var = jnp.ones((C,), jnp.float32)

    out = tf_enhance_encoder(x, z_mix, w, b, gamma, beta, run_mean, run_var)
    out = jax.block_until_ready(out)

    # pure-JAX reference (eval-mode BN), for correctness sanity check
    w2d = w.reshape(C, 2 * C)
    cat = jnp.concatenate([x, z_mix], axis=1)                          # (N, 2C, H, W)
    conv = jnp.einsum("oc,nchw->nohw", w2d, cat) + b[None, :, None, None]
    bn_out = (conv - run_mean[None, :, None, None]) / jnp.sqrt(
        run_var[None, :, None, None] + 1e-5)
    bn_out = bn_out * gamma[None, :, None, None] + beta[None, :, None, None]
    ref = x + jnp.maximum(bn_out, 0.0)

    assert out.shape == (N, C, H, W)
    assert jnp.allclose(out, ref, atol=1e-4, rtol=1e-4)
    print("KERNEL_OK")
</pallas_src>

<mosaic_0001>
module attributes {stable_mosaic.version = 11 : i64} {
  func.func @_tf_enhance_kernel(%arg0: i32, %arg1: i32, %arg2: memref<1x4x256xf32, #tpu.memory_space<vmem>>, %arg3: memref<1x4x256xf32, #tpu.memory_space<vmem>>, %arg4: memref<4x8xf32, #tpu.memory_space<vmem>>, %arg5: memref<4x1xf32, #tpu.memory_space<vmem>>, %arg6: memref<1x4x256xf32, #tpu.memory_space<vmem>>) attributes {dimension_semantics = [#tpu.dimension_semantics<parallel>, #tpu.dimension_semantics<parallel>], iteration_bounds = array<i64: 2, 1>, scalar_prefetch = 0 : i64, scratch_operands = 0 : i64, tpu.core_type = #tpu.core_type<tc>, window_params = [{transform_indices = @transform_0, window_bounds = array<i64: 1, 4, 256>}, {transform_indices = @transform_1, window_bounds = array<i64: 1, 4, 256>}, {pipeline_mode = #tpu.pipeline_mode<synchronous>, transform_indices = @transform_2, window_bounds = array<i64: 4, 8>}, {pipeline_mode = #tpu.pipeline_mode<synchronous>, transform_indices = @transform_3, window_bounds = array<i64: 4, 1>}, {transform_indices = @transform_4, window_bounds = array<i64: 1, 4, 256>}]} {
    %c0 = arith.constant 0 : index
    %c0_0 = arith.constant 0 : index
    %0 = vector.load %arg4[%c0, %c0_0] : memref<4x8xf32, #tpu.memory_space<vmem>>, vector<4x8xf32>
    %c0_1 = arith.constant 0 : index
    %c0_2 = arith.constant 0 : index
    %1 = vector.load %arg5[%c0_1, %c0_2] : memref<4x1xf32, #tpu.memory_space<vmem>>, vector<4x1xf32>
    %c0_3 = arith.constant 0 : index
    %c0_4 = arith.constant 0 : index
    %c0_5 = arith.constant 0 : index
    %2 = vector.load %arg2[%c0_3, %c0_4, %c0_5] : memref<1x4x256xf32, #tpu.memory_space<vmem>>, vector<1x4x256xf32>
    %3 = vector.shape_cast %2 : vector<1x4x256xf32> to vector<4x256xf32>
    %c0_6 = arith.constant 0 : index
    %c0_7 = arith.constant 0 : index
    %c0_8 = arith.constant 0 : index
    %4 = vector.load %arg3[%c0_6, %c0_7, %c0_8] : memref<1x4x256xf32, #tpu.memory_space<vmem>>, vector<1x4x256xf32>
    %5 = vector.shape_cast %4 : vector<1x4x256xf32> to vector<4x256xf32>
    %6 = tpu.concatenate %3, %5 in 0 : vector<4x256xf32>, vector<4x256xf32> -> vector<8x256xf32>
    %cst = arith.constant dense<0.000000e+00> : vector<4x256xf32>
    %7 = tpu.matmul %0, %6, %cst {dimension_numbers = #tpu.dot_dimension_numbers<[1], [0], [0], [1], [0, 0, 1, 1], [], []>} : vector<4x8xf32>, vector<8x256xf32>, vector<4x256xf32> -> vector<4x256xf32>
    %8 = vector.broadcast %1 : vector<4x1xf32> to vector<4x256xf32>
    %9 = arith.addf %7, %8 : vector<4x256xf32>
    %cst_9 = arith.constant 0.000000e+00 : f32
    %10 = vector.broadcast %cst_9 : f32 to vector<4x256xf32>
    %11 = arith.maximumf %9, %10 : vector<4x256xf32>
    %12 = arith.addf %3, %11 : vector<4x256xf32>
    %c0_10 = arith.constant 0 : index
    %c0_11 = arith.constant 0 : index
    %c0_12 = arith.constant 0 : index
    %13 = vector.load %arg6[%c0_10, %c0_11, %c0_12] : memref<1x4x256xf32, #tpu.memory_space<vmem>>, vector<1x4x256xf32>
    %14 = vector.shape_cast %13 : vector<1x4x256xf32> to vector<4x256xf32>
    %15 = vector.shape_cast %12 : vector<4x256xf32> to vector<1x4x256xf32>
    tpu.vector_store %arg6[%c0_10, %c0_11, %c0_12], %15 {strides = array<i32>} : memref<1x4x256xf32, #tpu.memory_space<vmem>>, vector<1x4x256xf32>,
    return
  }
  func.func @transform_0(%arg0: i32, %arg1: i32) -> (i32, i32, i32) {
    %c0_i32 = arith.constant 0 : i32
    %c0_i32_0 = arith.constant 0 : i32
    return %arg0, %c0_i32, %arg1 : i32, i32, i32
  }
  func.func @transform_1(%arg0: i32, %arg1: i32) -> (i32, i32, i32) {
    %c0_i32 = arith.constant 0 : i32
    %c0_i32_0 = arith.constant 0 : i32
    return %arg0, %c0_i32, %arg1 : i32, i32, i32
  }
  func.func @transform_2(%arg0: i32, %arg1: i32) -> (i32, i32) {
    %c0_i32 = arith.constant 0 : i32
    %c0_i32_0 = arith.constant 0 : i32
    %c0_i32_1 = arith.constant 0 : i32
    return %c0_i32, %c0_i32_0 : i32, i32
  }
  func.func @transform_3(%arg0: i32, %arg1: i32) -> (i32, i32) {
    %c0_i32 = arith.constant 0 : i32
    %c0_i32_0 = arith.constant 0 : i32
    %c0_i32_1 = arith.constant 0 : i32
    return %c0_i32, %c0_i32_0 : i32, i32
  }
  func.func @transform_4(%arg0: i32, %arg1: i32) -> (i32, i32, i32) {
    %c0_i32 = arith.constant 0 : i32
    %c0_i32_0 = arith.constant 0 : i32
    return %arg0, %c0_i32, %arg1 : i32, i32, i32
  }
}

</mosaic_0001>

<llo_original>
// kernel: tpu_custom_call.1
$region0: #{tpu_custom_call.1}
  #allocation0 [shape = 'u32[]', space=smem, size = 0x4, offset = 0x4, fixed_abs, tag = 'smem constant byte address 0x4 - core index']
  #allocation1 [shape = 'u32[144,128]{1,0:T(1,128)}', space=vmem, size = 0x12000, scoped, tag = 'internal scratch']
  %s0 = inlined_call_operand.hbm [shape: f32[2,4,256], index: 0, kind: input, shape index: {}]
  %s1 = inlined_call_operand.hbm [shape: f32[2,4,256], index: 1, kind: input, shape index: {}]
  %s2 = inlined_call_operand.vmem [shape: f32[4,8], index: 2, kind: input, shape index: {}]
  %s3 = inlined_call_operand.vmem [shape: f32[4,1], index: 3, kind: input, shape index: {}]
  %s4 = inlined_call_operand.hbm [shape: f32[2,4,256], index: 4, kind: output, shape index: {}]
  %s5 = sld [smem:[#allocation0]]
  $region57: #{tpu_custom_call.1} parent=0
    _
  %s7 = ssub.s32 1, %s5
  %s8 = scalar_select 0, %s7, %s5
  $region1: #{tpu_custom_call.1} parent=0
    #allocation2 [shape = 'u8[8192]{0}', space=vmem, size = 0x2000, scoped, tag = 'input window, operand 0']
    #allocation3 [shape = 's32[2]{0}', space=sflag, size = 0x8, scoped, tag = 'scoped memory for tpu_custom_call.1']
    #allocation4 [shape = 's32[2]{0}', space=sflag, size = 0x8, scoped, tag = 'scoped memory for tpu_custom_call.1']
    #allocation5 [shape = 'u8[8192]{0}', space=vmem, size = 0x2000, scoped, tag = 'input window, operand 1']
    #allocation6 [shape = 's32[2]{0}', space=sflag, size = 0x8, scoped, tag = 'scoped memory for tpu_custom_call.1']
    #allocation7 [shape = 'u8[8192]{0}', space=vmem, size = 0x2000, scoped, tag = 'output window, operand 0']
    %9 = vsyncpa [#allocation3], 0
    %s10 = scalar_lea.sflag [#allocation3], 1
    %11 = vsyncpa %s10, 0
    %12 = vsyncpa [#allocation6], 0
    %s13 = scalar_lea.sflag [#allocation6], 1
    %14 = vsyncpa %s13, 0
    %15 = vsyncpa [#allocation4], 0
    %s16 = scalar_lea.sflag [#allocation4], 1
    %17 = vsyncpa %s16, 0
    loop: start=0, step=1, limit=4
    $region2: #{tpu_custom_call.1} parent=1 // loop_pre_header
      _
    $region3: #{tpu_custom_call.1} parent=1 // loop_header
      %s19 = sphi 0, %s23
      %p20 = scmp.ge.s32.totalorder %s19, 4
      %s26 = sphi 0, %s38
      %s27 = sphi 0, %s34
      %s28 = sphi 0, %s26
      %s29 = sphi 0, %s27
      %s30 = sphi 0, %s28
      %s31 = sphi 0, %s29
      %s43 = sphi 0, %s45
      %s46 = sphi 0, %s43
      %s47 = sphi 0, %s46
      %s63 = sphi 0, %s47
      %s71 = sphi 0, %s73
      %s74 = sphi 0, %s71
      %s75 = sphi 0, %s74
      %s91 = sphi 0, %s75
      %s95 = sphi 0, %s95
      %s97 = sphi 0, %s95
      %s98 = sphi 0, %s97
      %s112 = sphi 0, %s98
      %s116 = sphi 0, %s116
      %s118 = sphi 0, %s116
      %s119 = sphi 0, %s118
      %s133 = sphi 0, %s119
      %s141 = sphi 0, %s143
      %s144 = sphi 0, %s141
      %s145 = sphi 0, %s144
      %s161 = sphi 0, %s145
    $region4: #{tpu_custom_call.1} parent=1 // loop_header_branch
      %22 = sbr.rel (%p20) target = $region8
    $region5: #{tpu_custom_call.1} parent=1 // loop_body
      %s24 = ssub.s32 %s19, 1
      %s25 = ssub.s32 %s19, 2
      %s32 = sadd.s32 1, %s27
      %p33 = scmp.ge.s32.totalorder %s32, 1
      %s34 = scalar_select %p33, 0, %s32
      %s35 = sadd.s32 1, %s26
      %s36 = scalar_select %p33, %s35, %s26
      %p37 = scmp.ge.s32.totalorder %s36, 2
      %s38 = scalar_select %p37, 0, %s36
      %s39 = ssub.s32 %s26, %s38
      %s40 = ssub.s32 %s27, %s34
      %s41 = sor.u32 %s39, %s40
      %p42 = scmp.eq.s32.totalorder %s41, 0
      %s44 = sadd.s32 %s43, 1
      %s45 = scalar_select %p42, %s43, %s44
      %p48 = pneg %p42
      %p49 = scmp.eq.s32.totalorder %s19, 1
      %p50 = por %p48, %p49
      %p51 = scmp.ne.s32.totalorder %s43, %s46
      %p52 = scmp.eq.s32.totalorder %s19, 0
      %p53 = por %p51, %p52
      %p54 = scmp.ne.s32.totalorder %s43, %s46
      %p55 = scmp.eq.s32.totalorder %s24, 1
      %p56 = por %p54, %p55
      %p57 = scmp.ne.s32.totalorder %s46, %s47
      %p58 = scmp.eq.s32.totalorder %s24, 0
      %p59 = por %p57, %p58
      %p60 = scmp.ne.s32.totalorder %s46, %s47
      %p61 = scmp.eq.s32.totalorder %s25, 1
      %p62 = por %p60, %p61
      %p64 = scmp.ne.s32.totalorder %s47, %s63
      %p65 = scmp.eq.s32.totalorder %s25, 0
      %p66 = por %p64, %p65
      %s67 = ssub.s32 %s26, %s38
      %s68 = ssub.s32 %s27, %s34
      %s69 = sor.u32 %s67, %s68
      %p70 = scmp.eq.s32.totalorder %s69, 0
      %s72 = sadd.s32 %s71, 1
      %s73 = scalar_select %p70, %s71, %s72
      %p76 = pneg %p70
      %p77 = scmp.eq.s32.totalorder %s19, 1
      %p78 = por %p76, %p77
      %p79 = scmp.ne.s32.totalorder %s71, %s74
      %p80 = scmp.eq.s32.totalorder %s19, 0
      %p81 = por %p79, %p80
      %p82 = scmp.ne.s32.totalorder %s71, %s74
      %p83 = scmp.eq.s32.totalorder %s24, 1
      %p84 = por %p82, %p83
      %p85 = scmp.ne.s32.totalorder %s74, %s75
      %p86 = scmp.eq.s32.totalorder %s24, 0
      %p87 = por %p85, %p86
      %p88 = scmp.ne.s32.totalorder %s74, %s75
      %p89 = scmp.eq.s32.totalorder %s25, 1
      %p90 = por %p88, %p89
      %p92 = scmp.ne.s32.totalorder %s75, %s91
      %p93 = scmp.eq.s32.totalorder %s25, 0
      %p94 = por %p92, %p93
      %s96 = sadd.s32 %s95, 1
      %p99 = scmp.eq.s32.totalorder %s19, 1
      %p100 = scmp.ne.s32.totalorder %s95, %s97
      %p101 = scmp.eq.s32.totalorder %s19, 0
      %p102 = por %p100, %p101
      %p103 = scmp.ne.s32.totalorder %s95, %s97
      %p104 = scmp.eq.s32.totalorder %s24, 1
      %p105 = por %p103, %p104
      %p106 = scmp.ne.s32.totalorder %s97, %s98
      %p107 = scmp.eq.s32.totalorder %s24, 0
      %p108 = por %p106, %p107
      %p109 = scmp.ne.s32.totalorder %s97, %s98
      %p110 = scmp.eq.s32.totalorder %s25, 1
      %p111 = por %p109, %p110
      %p113 = scmp.ne.s32.totalorder %s98, %s112
      %p114 = scmp.eq.s32.totalorder %s25, 0
      %p115 = por %p113, %p114
      %s117 = sadd.s32 %s116, 1
      %p120 = scmp.eq.s32.totalorder %s19, 1
      %p121 = scmp.ne.s32.totalorder %s116, %s118
      %p122 = scmp.eq.s32.totalorder %s19, 0
      %p123 = por %p121, %p122
      %p124 = scmp.ne.s32.totalorder %s116, %s118
      %p125 = scmp.eq.s32.totalorder %s24, 1
      %p126 = por %p124, %p125
      %p127 = scmp.ne.s32.totalorder %s118, %s119
      %p128 = scmp.eq.s32.totalorder %s24, 0
      %p129 = por %p127, %p128
      %p130 = scmp.ne.s32.totalorder %s118, %s119
      %p131 = scmp.eq.s32.totalorder %s25, 1
      %p132 = por %p130, %p131
      %p134 = scmp.ne.s32.totalorder %s119, %s133
      %p135 = scmp.eq.s32.totalorder %s25, 0
      %p136 = por %p134, %p135
      %s137 = ssub.s32 %s26, %s38
      %s138 = ssub.s32 %s27, %s34
      %s139 = sor.u32 %s137, %s138
      %p140 = scmp.eq.s32.totalorder %s139, 0
      %s142 = sadd.s32 %s141, 1
      %s143 = scalar_select %p140, %s141, %s142
      %p146 = pneg %p140
      %p147 = scmp.eq.s32.totalorder %s19, 1
      %p148 = por %p146, %p147
      %p149 = scmp.ne.s32.totalorder %s141, %s144
      %p150 = scmp.eq.s32.totalorder %s19, 0
      %p151 = por %p149, %p150
      %p152 = scmp.ne.s32.totalorder %s141, %s144
      %p153 = scmp.eq.s32.totalorder %s24, 1
      %p154 = por %p152, %p153
      %p155 = scmp.ne.s32.totalorder %s144, %s145
      %p156 = scmp.eq.s32.totalorder %s24, 0
      %p157 = por %p155, %p156
      %p158 = scmp.ne.s32.totalorder %s144, %s145
      %p159 = scmp.eq.s32.totalorder %s25, 1
      %p160 = por %p158, %p159
      %p162 = scmp.ne.s32.totalorder %s145, %s161
      %p163 = scmp.eq.s32.totalorder %s25, 0
      %p164 = por %p162, %p163
      %p165 = scmp.le.s32.totalorder 1, %s19
      %p166 = scmp.lt.s32.totalorder %s19, 3
      %p167 = pnand %p165, %p166
      %p168 = pneg %p167
      // Predicated region
      $region9: #{tpu_custom_call.1} parent=5 // pred_check
        _
      $region10: #{tpu_custom_call.1} parent=5 // pred_check_branch
        %170 = sbr.rel (%p167) target = $region12
      $region11: #{tpu_custom_call.1} parent=5 // pred_region
        %s171 = ssub.s32 %s19, 1
        // Predicated region
        $region13: #{tpu_custom_call.1} parent=11 // pred_check
          %p172 = pneg %p108
        $region14: #{tpu_custom_call.1} parent=11 // pred_check_branch
          %174 = sbr.rel (%p172) target = $region16
        $region15: #{tpu_custom_call.1} parent=11 // pred_region
          _
        $region16: #{tpu_custom_call.1} parent=11 // pred_fallthru
          _
        // Predicated region
        $region17: #{tpu_custom_call.1} parent=11 // pred_check
          %p175 = pneg %p129
        $region18: #{tpu_custom_call.1} parent=11 // pred_check_branch
          %177 = sbr.rel (%p175) target = $region20
        $region19: #{tpu_custom_call.1} parent=11 // pred_region
          _
        $region20: #{tpu_custom_call.1} parent=11 // pred_fallthru
          _
      $region12: #{tpu_custom_call.1} parent=5 // pred_fallthru
        _
      %p178 = scmp.lt.s32.totalorder %s19, 2
      // Predicated region
      $region21: #{tpu_custom_call.1} parent=5 // pred_check
        %p179 = pneg %p178
      $region22: #{tpu_custom_call.1} parent=5 // pred_check_branch
        %181 = sbr.rel (%p179) target = $region24
      $region23: #{tpu_custom_call.1} parent=5 // pred_region
        // Predicated region
        $region25: #{tpu_custom_call.1} parent=23 // pred_check
          %p182 = pneg %p53
        $region26: #{tpu_custom_call.1} parent=23 // pred_check_branch
          %184 = sbr.rel (%p182) target = $region28
        $region27: #{tpu_custom_call.1} parent=23 // pred_region
          %s185 = sand.u32 %s43, 1
          %s186 = scalar_lea.sflag [#allocation3], %s185
          %s187 = sand.u32 %s43, 1
          %s188 = smul.addr %s187, 8
          %s189 = scalar_lea.vmem [#allocation2], %s188
          %s190 = smul.u32 2, %s27
          %s192 = ssub.s32 128, 128
          %193 = vsyncadd %s186, %s192
          %s194 = smul.addr %s26, 2
          %s195 = sadd.s32 %s190, %s194
          %s196 = smul.addr %s195, 64
          %s197 = scalar_lea.hbm %s0, %s196
          %s199 = sshll.u32 %s189, 4
          %s200 = int_to_ptr.vmem [resolvable:$true] %s199
          %202 = dma.hbm_to_vmem [thread:$0]  %s197, 128, %s200, %s186
        $region28: #{tpu_custom_call.1} parent=23 // pred_fallthru
          _
        // Predicated region
        $region29: #{tpu_custom_call.1} parent=23 // pred_check
          %p203 = pneg %p81
        $region30: #{tpu_custom_call.1} parent=23 // pred_check_branch
          %205 = sbr.rel (%p203) target = $region32
        $region31: #{tpu_custom_call.1} parent=23 // pred_region
          %s206 = sand.u32 %s71, 1
          %s207 = scalar_lea.sflag [#allocation6], %s206
          %s208 = sand.u32 %s71, 1
          %s209 = smul.addr %s208, 8
          %s210 = scalar_lea.vmem [#allocation5], %s209
          %s211 = smul.u32 2, %s27
          %s213 = ssub.s32 128, 128
          %214 = vsyncadd %s207, %s213
          %s215 = smul.addr %s26, 2
          %s216 = sadd.s32 %s211, %s215
          %s217 = smul.addr %s216, 64
          %s218 = scalar_lea.hbm %s1, %s217
          %s220 = sshll.u32 %s210, 4
          %s221 = int_to_ptr.vmem [resolvable:$true] %s220
          %223 = dma.hbm_to_vmem [thread:$0]  %s218, 128, %s221, %s207
        $region32: #{tpu_custom_call.1} parent=23 // pred_fallthru
          _
      $region24: #{tpu_custom_call.1} parent=5 // pred_fallthru
        _
      %p224 = scmp.le.s32.totalorder 1, %s19
      %p225 = scmp.lt.s32.totalorder %s19, 3
      %p226 = pnand %p224, %p225
      %p227 = pneg %p226
      // Predicated region
      $region33: #{tpu_custom_call.1} parent=5 // pred_check
        _
      $region34: #{tpu_custom_call.1} parent=5 // pred_check_branch
        %229 = sbr.rel (%p226) target = $region36
      $region35: #{tpu_custom_call.1} parent=5 // pred_region
        %s230 = ssub.s32 %s19, 1
        %s231 = sand.u32 %s46, 1
        %s232 = scalar_lea.sflag [#allocation3], %s231
        %s233 = sand.u32 %s46, 1
        %s234 = smul.addr %s233, 8
        %s235 = scalar_lea.vmem [#allocation2], %s234
        // Predicated region
        $region37: #{tpu_custom_call.1} parent=35 // pred_check
          %p236 = pneg %p59
        $region38: #{tpu_custom_call.1} parent=35 // pred_check_branch
          %238 = sbr.rel (%p236) target = $region40
        $region39: #{tpu_custom_call.1} parent=35 // pred_region
          %239 = dma.done %s232, 128
        $region40: #{tpu_custom_call.1} parent=35 // pred_fallthru
          _
        %s240 = sand.u32 %s74, 1
        %s241 = scalar_lea.sflag [#allocation6], %s240
        %s242 = sand.u32 %s74, 1
        %s243 = smul.addr %s242, 8
        %s244 = scalar_lea.vmem [#allocation5], %s243
        // Predicated region
        $region41: #{tpu_custom_call.1} parent=35 // pred_check
          %p245 = pneg %p87
        $region42: #{tpu_custom_call.1} parent=35 // pred_check_branch
          %247 = sbr.rel (%p245) target = $region44
        $region43: #{tpu_custom_call.1} parent=35 // pred_region
          %248 = dma.done %s241, 128
        $region44: #{tpu_custom_call.1} parent=35 // pred_fallthru
          _
        %s249 = sand.u32 %s46, 1
        %s250 = scalar_lea.sflag [#allocation3], %s249
        %s251 = sand.u32 %s46, 1
        %s252 = smul.addr %s251, 8
        %s253 = scalar_lea.vmem [#allocation2], %s252
        %p254 = pneg %p59
        %p255 = pneg %p56
        %s256 = sand.u32 %s74, 1
        %s257 = scalar_lea.sflag [#allocation6], %s256
        %s258 = sand.u32 %s74, 1
        %s259 = smul.addr %s258, 8
        %s260 = scalar_lea.vmem [#allocation5], %s259
        %p261 = pneg %p87
        %p262 = pneg %p84
        %p263 = pneg %p108
        %p264 = pneg %p105
        %p265 = pneg %p129
        %p266 = pneg %p126
        %p267 = pneg %p157
        %p268 = pneg %p154
        %s269 = sand.u32 %s144, 1
        %s270 = scalar_lea.sflag [#allocation4], %s269
        %s271 = sand.u32 %s144, 1
        %s272 = smul.addr %s271, 8
        %s273 = scalar_lea.vmem [#allocation7], %s272
        %s274 = smul.u32 2, %s29
        %s275 = smul.u32 2, %s29
        %s276 = smul.u32 2, %s29
        %v277 = vld [vmem:[%s2] sm:$0xf]
        %v278 = vld [vmem:[%s3] sm:$0xf]
        %v279 = vld [vmem:[%s235] sm:$0xff]
        %v280 = vld [vmem:[%s244] sm:$0xff]
        %v282 = vcombine.high %v279, %v279
        %v285 = vcombine.low %v280, %v280
        %vm287 = vcmask 1043456
        %v288 = vsel %vm287, %v279, %v285
        %v289 = vsel %vm287, %v282, %v280
        %291 = vset.pattern.permute.xlu0 0
        %292 = vperm.xlu0 %291, %v278
        %v293 = vpop.permute.xlu0 %292
        %vm295 = vcmask 64512
        %v297 = vsel %vm295, %v277, 0
        %299 = vmatprep.subr.mxu0 0.0
        %300 = vmatpush1.msra.mxu0 0.0
        %301 = vmatprep.subr.mxu0 0.0
        %302 = vmatpush1.msra.mxu0 0.0
        %303 = vmatprep.subr.mxu0 0.0
        %304 = vmatpush1.msra.mxu0 0.0
        %305 = vmatprep.subr.mxu0 0.0
        %306 = vmatpush1.msra.mxu0 0.0
        %307 = vmatprep.subr.mxu0 0.0
        %308 = vmatpush1.msra.mxu0 0.0
        %309 = vmatprep.subr.mxu0 0.0
        %310 = vmatpush1.msra.mxu0 0.0
        %311 = vmatprep.subr.mxu0 0.0
        %312 = vmatpush1.msra.mxu0 0.0
        %313 = vmatprep.subr.mxu0 0.0
        %314 = vmatpush1.msra.mxu0 0.0
        %315 = vmatprep.subr.mxu0 0.0
        %316 = vmatpush1.msra.mxu0 0.0
        %317 = vmatprep.subr.mxu0 0.0
        %318 = vmatpush1.msra.mxu0 0.0
        %319 = vmatprep.subr.mxu0 0.0
        %320 = vmatpush1.msra.mxu0 0.0
        %321 = vmatprep.subr.mxu0 0.0
        %322 = vmatpush1.msra.mxu0 0.0
        %323 = vmatprep.subr.mxu0 0.0
        %324 = vmatpush1.msra.mxu0 0.0
        %325 = vmatprep.subr.mxu0 0.0
        %326 = vmatpush1.msra.mxu0 0.0
        %327 = vmatprep.subr.mxu0 0.0
        %328 = vmatpush1.msra.mxu0 0.0
        %329 = vmatprep.subr.mxu0 %v289
        %330 = vmatpush1.msra.mxu0 %v288
        %331 = vmatprep.subr.mxu0 0.0
        %332 = vmatpush2.msra.mxu0 0.0
        %333 = vmatprep.subr.mxu0 0.0
        %334 = vmatpush2.msra.mxu0 0.0
        %335 = vmatprep.subr.mxu0 0.0
        %336 = vmatpush2.msra.mxu0 0.0
        %337 = vmatprep.subr.mxu0 0.0
        %338 = vmatpush2.msra.mxu0 0.0
        %339 = vmatprep.subr.mxu0 0.0
        %340 = vmatpush2.msra.mxu0 0.0
        %341 = vmatprep.subr.mxu0 0.0
        %342 = vmatpush2.msra.mxu0 0.0
        %343 = vmatprep.subr.mxu0 0.0
        %344 = vmatpush2.msra.mxu0 0.0
        %345 = vmatprep.subr.mxu0 0.0
        %346 = vmatpush2.msra.mxu0 0.0
        %347 = vmatprep.subr.mxu0 0.0
        %348 = vmatpush2.msra.mxu0 0.0
        %349 = vmatprep.subr.mxu0 0.0
        %350 = vmatpush2.msra.mxu0 0.0
        %351 = vmatprep.subr.mxu0 0.0
        %352 = vmatpush2.msra.mxu0 0.0
        %353 = vmatprep.subr.mxu0 0.0
        %354 = vmatpush2.msra.mxu0 0.0
        %355 = vmatprep.subr.mxu0 0.0
        %356 = vmatpush2.msra.mxu0 0.0
        %357 = vmatprep.subr.mxu0 0.0
        %358 = vmatpush2.msra.mxu0 0.0
        %359 = vmatprep.subr.mxu0 0.0
        %360 = vmatpush2.msra.mxu0 0.0
        %361 = vmatprep.subr.mxu0 0.0
        %362 = vmatpush2.msra.mxu0 0.0
        %363 = vmatprep.mubr.f32.mxu0 0.0
        %364 = vmatmul.mubr.f32.gmra.mxu0 %v297
        %v365 = vpop.f32.mrf.mxu0
        %v366 = vadd.f32 %v293, %v365
        %v367 = vpop.f32.mrf.mxu0
        %v368 = vadd.f32 %v293, %v367
        %369 = vdwg.mxu0
        %v370 = vmax.f32 %v366, 0.0
        %v371 = vmax.f32 %v368, 0.0
        %v374 = vcombine.low %v370, %v371
        %v376 = vadd.f32 %v279, %v374
        %377 = vst [vmem:[%s273] sm:$0xff] %v376
        %s378 = sand.u32 %s144, 1
        %s379 = scalar_lea.sflag [#allocation4], %s378
        %s380 = sand.u32 %s144, 1
        %s381 = smul.addr %s380, 8
        %s382 = scalar_lea.vmem [#allocation7], %s381
        // Predicated region
        $region45: #{tpu_custom_call.1} parent=35 // pred_check
          %p383 = pneg %p154
        $region46: #{tpu_custom_call.1} parent=35 // pred_check_branch
          %385 = sbr.rel (%p383) target = $region48
        $region47: #{tpu_custom_call.1} parent=35 // pred_region
          %s386 = smul.u32 2, %s29
          %s388 = ssub.s32 128, 128
          %389 = vsyncadd %s379, %s388
          %s390 = smul.addr %s28, 2
          %s391 = sadd.s32 %s386, %s390
          %s392 = smul.addr %s391, 64
          %s393 = scalar_lea.hbm %s4, %s392
          %s395 = sshll.u32 %s382, 4
          %s396 = int_to_ptr.vmem [resolvable:$true] %s395
          %398 = dma.vmem_to_hbm [thread:$0]  %s396, 128, %s393, %s379
        $region48: #{tpu_custom_call.1} parent=35 // pred_fallthru
          _
      $region36: #{tpu_custom_call.1} parent=5 // pred_fallthru
        _
      %p399 = scmp.le.s32.totalorder 2, %s19
      // Predicated region
      $region49: #{tpu_custom_call.1} parent=5 // pred_check
        %p400 = pneg %p399
      $region50: #{tpu_custom_call.1} parent=5 // pred_check_branch
        %402 = sbr.rel (%p400) target = $region52
      $region51: #{tpu_custom_call.1} parent=5 // pred_region
        %s403 = ssub.s32 %s19, 2
        // Predicated region
        $region53: #{tpu_custom_call.1} parent=51 // pred_check
          %p404 = pneg %p160
        $region54: #{tpu_custom_call.1} parent=51 // pred_check_branch
          %406 = sbr.rel (%p404) target = $region56
        $region55: #{tpu_custom_call.1} parent=51 // pred_region
          %s407 = sand.u32 %s145, 1
          %s408 = scalar_lea.sflag [#allocation4], %s407
          %s409 = sand.u32 %s145, 1
          %s410 = smul.addr %s409, 8
          %s411 = scalar_lea.vmem [#allocation7], %s410
          %412 = dma.done %s408, 128
        $region56: #{tpu_custom_call.1} parent=51 // pred_fallthru
          _
      $region52: #{tpu_custom_call.1} parent=5 // pred_fallthru
        _
    $region6: #{tpu_custom_call.1} parent=1 // loop_footer
      %s23 = sadd.s32 1, %s19
    $region7: #{tpu_custom_call.1} parent=1 // loop_footer_branch
      %18 = sbr.rel target = $region3
    $region8: #{tpu_custom_call.1} parent=1 // loop_exit
      _
    %413 = vsyncpa [#allocation3], 1
    %s414 = scalar_lea.sflag [#allocation3], 1
    %415 = vsyncpa %s414, 1
    %416 = vsyncpa [#allocation6], 1
    %s417 = scalar_lea.sflag [#allocation6], 1
    %418 = vsyncpa %s417, 1
    %419 = vsyncpa [#allocation4], 1
    %s420 = scalar_lea.sflag [#allocation4], 1
    %421 = vsyncpa %s420, 1

</llo_original>
